<compile_context>
chip_gen: v5e
topology: v5e:2x2
jax: 0.10.0
libtpu: 0.0.40
codegen_flags: <defaults>
</compile_context>

<pallas_src>
import jax
import jax.numpy as jnp
from jax.experimental import pallas as pl
from jax.experimental.pallas import tpu as pltpu

LANE = 128
MAX_TR = 2048  # 2048 * 128 * 4B = 1 MiB per f32 input buffer


def _cdiv(a, b):
    return (a + b - 1) // b


def _make_cel_kernel(tr, acc_rows, n_elem, needs_mask):
    """Build the fused 4-way BCE-with-logits reduction kernel.

    Grid = (tiles,).  Refs:
      p*_ref : (tr, LANE)         - logits tile of prediction k (native dtype)
      tgt_ref: (tr, LANE)         - target tile (streamed once per position)
      out_ref: (1, 4) f32 SMEM    - per-prediction loss sums
      acc_ref: (4, acc_rows, LANE) f32 VMEM - lane-parallel running sums
    """

    def kernel(p0_ref, p1_ref, p2_ref, p3_ref, tgt_ref, out_ref, acc_ref):
        j = pl.program_id(0)

        @pl.when(j == 0)
        def _():
            acc_ref[...] = jnp.zeros_like(acc_ref)

        z = tgt_ref[...].astype(jnp.float32)

        if needs_mask:
            # Global element index of each position in this tile; elements at
            # or beyond n_elem (pad rows / partial-last-block garbage) get a
            # hard 0.0 via select, so NaN/Inf garbage cannot propagate.
            row_ids = jax.lax.broadcasted_iota(jnp.int32, (tr, LANE), 0)
            lane_ids = jax.lax.broadcasted_iota(jnp.int32, (tr, LANE), 1)
            elem_ids = (j * tr + row_ids) * LANE + lane_ids
            valid = elem_ids < n_elem

        for k, p_ref in enumerate((p0_ref, p1_ref, p2_ref, p3_ref)):
            x = p_ref[...].astype(jnp.float32)
            # Numerically stable BCE-with-logits (same formula PyTorch uses).
            loss = jnp.maximum(x, 0.0) - x * z + jnp.log1p(jnp.exp(-jnp.abs(x)))
            if needs_mask:
                loss = jnp.where(valid, loss, 0.0)
            if tr != acc_rows:
                # Sublane-group tree add: (tr,128) -> (8,128), pure VPU adds.
                loss = jnp.sum(loss.reshape(tr // 8, 8, LANE), axis=0)
            acc_ref[k] += loss

        @pl.when(j == pl.num_programs(0) - 1)
        def _():
            for k in range(4):
                out_ref[0, k] = jnp.sum(acc_ref[k])  # small XLU reduce, once

    return kernel


def cel_no_bem(pred, masks, *, max_tr=MAX_TR):
    """pred: tuple of 4 arrays (B, 1, H, W); masks: (B, C, H, W).

    Returns dict of scalar f32 losses {'A', 'B', 'M3', 'M4'} (mean reduction).
    """
    target = masks[:, 0, :, :]            # single cheap slice; no pad passes
    n_elem = int(target.size)
    rows = _cdiv(n_elem, LANE)

    def to2d(x):
        flat = x.reshape(-1)
        if int(flat.size) != rows * LANE:
            # Only when n_elem % 128 != 0 (rare).  Pad value is irrelevant:
            # the in-kernel validity mask zeroes these positions.
            flat = jnp.pad(flat, (0, rows * LANE - n_elem))
        return flat.reshape(rows, LANE)

    tgt2d = to2d(target)
    preds2d = [to2d(p) for p in pred]

    # Tile rows: full extent when it fits (any row count is a legal full-dim
    # block); otherwise MAX_TR (multiple of 8/16) with a masked partial tail.
    tr = rows if rows <= max_tr else max_tr
    tiles = _cdiv(rows, tr)
    acc_rows = 8 if (tr % 8 == 0) else tr
    needs_mask = (tiles * tr * LANE) != n_elem

    kernel = _make_cel_kernel(tr, acc_rows, n_elem, needs_mask)

    row_spec = pl.BlockSpec((tr, LANE), lambda j: (j, 0))

    in_bytes = sum(int(a.size) * a.dtype.itemsize for a in (*preds2d, tgt2d))
    cost = pl.CostEstimate(
        flops=24 * n_elem,          # ~6 VALU flops / element / prediction
        transcendentals=8 * n_elem,  # exp + log1p per element per prediction
        bytes_accessed=in_bytes + 16,
    )

    out = pl.pallas_call(
        kernel,
        out_shape=jax.ShapeDtypeStruct((1, 4), jnp.float32),
        grid_spec=pltpu.PrefetchScalarGridSpec(
            num_scalar_prefetch=0,
            grid=(tiles,),
            in_specs=[row_spec, row_spec, row_spec, row_spec, row_spec],
            out_specs=pl.BlockSpec((1, 4), lambda j: (0, 0),
                                   memory_space=pltpu.SMEM),
            scratch_shapes=[pltpu.VMEM((4, acc_rows, LANE), jnp.float32)],
        ),
        compiler_params=pltpu.CompilerParams(
            # Reduction axis -> "arbitrary".  On v7x a leading CORE_PARALLEL
            # axis would split rows across the two TensorCores.
            dimension_semantics=("arbitrary",),
            vmem_limit_bytes=32 * 1024 * 1024,
        ),
        cost_estimate=cost,
    )(*preds2d, tgt2d)

    sums = out[0] / jnp.float32(n_elem)
    return {"A": sums[0], "B": sums[1], "M3": sums[2], "M4": sums[3]}


def _reference(pred, masks):
    target = masks[:, 0:1, :, :].astype(jnp.float32)

    def bce(x):
        x = x.astype(jnp.float32)
        return jnp.mean(jnp.maximum(x, 0.0) - x * target
                        + jnp.log1p(jnp.exp(-jnp.abs(x))))

    keys = ["A", "B", "M3", "M4"]
    return {k: bce(p) for k, p in zip(keys, pred)}


def _check(pred, masks, **kw):
    losses = cel_no_bem(pred, masks, **kw)
    losses = {k: jax.block_until_ready(v) for k, v in losses.items()}
    ref = _reference(pred, masks)
    for k in ["A", "B", "M3", "M4"]:
        assert jnp.allclose(losses[k], ref[k], atol=1e-5, rtol=1e-5), (
            k, losses[k], ref[k])


if __name__ == "__main__":
    key = jax.random.PRNGKey(0)

    def make_case(key, B, C, H, W):
        k1, k2, k3, k4, k5 = jax.random.split(key, 5)
        pred = tuple(
            jax.random.normal(kk, (B, 1, H, W), jnp.float32)
            for kk in (k1, k2, k3, k4))
        masks = (jax.random.uniform(k5, (B, C, H, W)) > 0.5).astype(jnp.float32)
        return pred, masks

    key, k_a, k_b, k_c = jax.random.split(key, 4)

    # Main case: single full-extent tile, no masking (512 elements = 4 rows).
    pred, masks = make_case(k_a, 2, 4, 16, 16)
    _check(pred, masks)

    # Ragged case: H*W not a multiple of 128 -> exercises the in-kernel mask.
    pred_r, masks_r = make_case(k_b, 2, 4, 15, 15)
    _check(pred_r, masks_r)

    # Multi-tile case (small max_tr forces the pipelined / grouped-acc path).
    pred_m, masks_m = make_case(k_c, 2, 4, 32, 32)
    _check(pred_m, masks_m, max_tr=8)

    print("KERNEL_OK")
</pallas_src>

<mosaic_0001>
module attributes {stable_mosaic.version = 11 : i64} {
  func.func @kernel(%arg0: i32, %arg1: memref<4x128xf32, #tpu.memory_space<vmem>>, %arg2: memref<4x128xf32, #tpu.memory_space<vmem>>, %arg3: memref<4x128xf32, #tpu.memory_space<vmem>>, %arg4: memref<4x128xf32, #tpu.memory_space<vmem>>, %arg5: memref<4x128xf32, #tpu.memory_space<vmem>>, %arg6: memref<1x4xf32, #tpu.memory_space<smem>>, %arg7: memref<4x4x128xf32, #tpu.memory_space<vmem>>) attributes {dimension_semantics = [#tpu.dimension_semantics<arbitrary>], iteration_bounds = array<i64: 1>, scalar_prefetch = 0 : i64, scratch_operands = 1 : i64, tpu.core_type = #tpu.core_type<tc>, window_params = [{transform_indices = @transform_0, window_bounds = array<i64: 4, 128>}, {transform_indices = @transform_1, window_bounds = array<i64: 4, 128>}, {transform_indices = @transform_2, window_bounds = array<i64: 4, 128>}, {transform_indices = @transform_3, window_bounds = array<i64: 4, 128>}, {transform_indices = @transform_4, window_bounds = array<i64: 4, 128>}, {transform_indices = @transform_5, window_bounds = array<i64: 1, 4>}]} {
    %c0_i32 = arith.constant 0 : i32
    %0 = arith.cmpi eq, %arg0, %c0_i32 : i32
    %1 = arith.extui %0 : i1 to i32
    %c0_i32_0 = arith.constant 0 : i32
    %2 = arith.cmpi ne, %1, %c0_i32_0 : i32
    scf.if %2 {
      %cst_40 = arith.constant 0.000000e+00 : f32
      %75 = vector.broadcast %cst_40 : f32 to vector<4x4x128xf32>
      %c0_41 = arith.constant 0 : index
      %c0_42 = arith.constant 0 : index
      %c0_43 = arith.constant 0 : index
      %76 = vector.load %arg7[%c0_41, %c0_42, %c0_43] : memref<4x4x128xf32, #tpu.memory_space<vmem>>, vector<4x4x128xf32>
      tpu.vector_store %arg7[%c0_41, %c0_42, %c0_43], %75 {strides = array<i32>} : memref<4x4x128xf32, #tpu.memory_space<vmem>>, vector<4x4x128xf32>,
    } else {
    }
    %c0 = arith.constant 0 : index
    %c0_1 = arith.constant 0 : index
    %3 = vector.load %arg5[%c0, %c0_1] : memref<4x128xf32, #tpu.memory_space<vmem>>, vector<4x128xf32>
    %c0_2 = arith.constant 0 : index
    %c0_3 = arith.constant 0 : index
    %4 = vector.load %arg1[%c0_2, %c0_3] : memref<4x128xf32, #tpu.memory_space<vmem>>, vector<4x128xf32>
    %cst = arith.constant 0.000000e+00 : f32
    %5 = vector.broadcast %cst : f32 to vector<4x128xf32>
    %6 = arith.maximumf %4, %5 : vector<4x128xf32>
    %7 = arith.mulf %4, %3 : vector<4x128xf32>
    %8 = arith.subf %6, %7 : vector<4x128xf32>
    %9 = math.absf %4 : vector<4x128xf32>
    %cst_4 = arith.constant 0.000000e+00 : f32
    %10 = vector.broadcast %cst_4 : f32 to vector<4x128xf32>
    %11 = arith.subf %10, %9 : vector<4x128xf32>
    %12 = math.exp %11 : vector<4x128xf32>
    %13 = math.log1p %12 : vector<4x128xf32>
    %14 = arith.addf %8, %13 : vector<4x128xf32>
    %c0_5 = arith.constant 0 : index
    %c0_6 = arith.constant 0 : index
    %c0_7 = arith.constant 0 : index
    %15 = vector.load %arg7[%c0_5, %c0_6, %c0_7] : memref<4x4x128xf32, #tpu.memory_space<vmem>>, vector<1x4x128xf32>
    %16 = vector.shape_cast %15 : vector<1x4x128xf32> to vector<4x128xf32>
    %17 = arith.addf %16, %14 : vector<4x128xf32>
    %c0_8 = arith.constant 0 : index
    %c0_9 = arith.constant 0 : index
    %c0_10 = arith.constant 0 : index
    %18 = vector.load %arg7[%c0_8, %c0_9, %c0_10] : memref<4x4x128xf32, #tpu.memory_space<vmem>>, vector<1x4x128xf32>
    %19 = vector.shape_cast %18 : vector<1x4x128xf32> to vector<4x128xf32>
    %20 = vector.shape_cast %17 : vector<4x128xf32> to vector<1x4x128xf32>
    tpu.vector_store %arg7[%c0_8, %c0_9, %c0_10], %20 {strides = array<i32>} : memref<4x4x128xf32, #tpu.memory_space<vmem>>, vector<1x4x128xf32>,
    %c0_11 = arith.constant 0 : index
    %c0_12 = arith.constant 0 : index
    %21 = vector.load %arg2[%c0_11, %c0_12] : memref<4x128xf32, #tpu.memory_space<vmem>>, vector<4x128xf32>
    %cst_13 = arith.constant 0.000000e+00 : f32
    %22 = vector.broadcast %cst_13 : f32 to vector<4x128xf32>
    %23 = arith.maximumf %21, %22 : vector<4x128xf32>
    %24 = arith.mulf %21, %3 : vector<4x128xf32>
    %25 = arith.subf %23, %24 : vector<4x128xf32>
    %26 = math.absf %21 : vector<4x128xf32>
    %cst_14 = arith.constant 0.000000e+00 : f32
    %27 = vector.broadcast %cst_14 : f32 to vector<4x128xf32>
    %28 = arith.subf %27, %26 : vector<4x128xf32>
    %29 = math.exp %28 : vector<4x128xf32>
    %30 = math.log1p %29 : vector<4x128xf32>
    %31 = arith.addf %25, %30 : vector<4x128xf32>
    %c1 = arith.constant 1 : index
    %c0_15 = arith.constant 0 : index
    %c0_16 = arith.constant 0 : index
    %32 = vector.load %arg7[%c1, %c0_15, %c0_16] : memref<4x4x128xf32, #tpu.memory_space<vmem>>, vector<1x4x128xf32>
    %33 = vector.shape_cast %32 : vector<1x4x128xf32> to vector<4x128xf32>
    %34 = arith.addf %33, %31 : vector<4x128xf32>
    %c1_17 = arith.constant 1 : index
    %c0_18 = arith.constant 0 : index
    %c0_19 = arith.constant 0 : index
    %35 = vector.load %arg7[%c1_17, %c0_18, %c0_19] : memref<4x4x128xf32, #tpu.memory_space<vmem>>, vector<1x4x128xf32>
    %36 = vector.shape_cast %35 : vector<1x4x128xf32> to vector<4x128xf32>
    %37 = vector.shape_cast %34 : vector<4x128xf32> to vector<1x4x128xf32>
    tpu.vector_store %arg7[%c1_17, %c0_18, %c0_19], %37 {strides = array<i32>} : memref<4x4x128xf32, #tpu.memory_space<vmem>>, vector<1x4x128xf32>,
    %c0_20 = arith.constant 0 : index
    %c0_21 = arith.constant 0 : index
    %38 = vector.load %arg3[%c0_20, %c0_21] : memref<4x128xf32, #tpu.memory_space<vmem>>, vector<4x128xf32>
    %cst_22 = arith.constant 0.000000e+00 : f32
    %39 = vector.broadcast %cst_22 : f32 to vector<4x128xf32>
    %40 = arith.maximumf %38, %39 : vector<4x128xf32>
    %41 = arith.mulf %38, %3 : vector<4x128xf32>
    %42 = arith.subf %40, %41 : vector<4x128xf32>
    %43 = math.absf %38 : vector<4x128xf32>
    %cst_23 = arith.constant 0.000000e+00 : f32
    %44 = vector.broadcast %cst_23 : f32 to vector<4x128xf32>
    %45 = arith.subf %44, %43 : vector<4x128xf32>
    %46 = math.exp %45 : vector<4x128xf32>
    %47 = math.log1p %46 : vector<4x128xf32>
    %48 = arith.addf %42, %47 : vector<4x128xf32>
    %c2 = arith.constant 2 : index
    %c0_24 = arith.constant 0 : index
    %c0_25 = arith.constant 0 : index
    %49 = vector.load %arg7[%c2, %c0_24, %c0_25] : memref<4x4x128xf32, #tpu.memory_space<vmem>>, vector<1x4x128xf32>
    %50 = vector.shape_cast %49 : vector<1x4x128xf32> to vector<4x128xf32>
    %51 = arith.addf %50, %48 : vector<4x128xf32>
    %c2_26 = arith.constant 2 : index
    %c0_27 = arith.constant 0 : index
    %c0_28 = arith.constant 0 : index
    %52 = vector.load %arg7[%c2_26, %c0_27, %c0_28] : memref<4x4x128xf32, #tpu.memory_space<vmem>>, vector<1x4x128xf32>
    %53 = vector.shape_cast %52 : vector<1x4x128xf32> to vector<4x128xf32>
    %54 = vector.shape_cast %51 : vector<4x128xf32> to vector<1x4x128xf32>
    tpu.vector_store %arg7[%c2_26, %c0_27, %c0_28], %54 {strides = array<i32>} : memref<4x4x128xf32, #tpu.memory_space<vmem>>, vector<1x4x128xf32>,
    %c0_29 = arith.constant 0 : index
    %c0_30 = arith.constant 0 : index
    %55 = vector.load %arg4[%c0_29, %c0_30] : memref<4x128xf32, #tpu.memory_space<vmem>>, vector<4x128xf32>
    %cst_31 = arith.constant 0.000000e+00 : f32
    %56 = vector.broadcast %cst_31 : f32 to vector<4x128xf32>
    %57 = arith.maximumf %55, %56 : vector<4x128xf32>
    %58 = arith.mulf %55, %3 : vector<4x128xf32>
    %59 = arith.subf %57, %58 : vector<4x128xf32>
    %60 = math.absf %55 : vector<4x128xf32>
    %cst_32 = arith.constant 0.000000e+00 : f32
    %61 = vector.broadcast %cst_32 : f32 to vector<4x128xf32>
    %62 = arith.subf %61, %60 : vector<4x128xf32>
    %63 = math.exp %62 : vector<4x128xf32>
    %64 = math.log1p %63 : vector<4x128xf32>
    %65 = arith.addf %59, %64 : vector<4x128xf32>
    %c3 = arith.constant 3 : index
    %c0_33 = arith.constant 0 : index
    %c0_34 = arith.constant 0 : index
    %66 = vector.load %arg7[%c3, %c0_33, %c0_34] : memref<4x4x128xf32, #tpu.memory_space<vmem>>, vector<1x4x128xf32>
    %67 = vector.shape_cast %66 : vector<1x4x128xf32> to vector<4x128xf32>
    %68 = arith.addf %67, %65 : vector<4x128xf32>
    %c3_35 = arith.constant 3 : index
    %c0_36 = arith.constant 0 : index
    %c0_37 = arith.constant 0 : index
    %69 = vector.load %arg7[%c3_35, %c0_36, %c0_37] : memref<4x4x128xf32, #tpu.memory_space<vmem>>, vector<1x4x128xf32>
    %70 = vector.shape_cast %69 : vector<1x4x128xf32> to vector<4x128xf32>
    %71 = vector.shape_cast %68 : vector<4x128xf32> to vector<1x4x128xf32>
    tpu.vector_store %arg7[%c3_35, %c0_36, %c0_37], %71 {strides = array<i32>} : memref<4x4x128xf32, #tpu.memory_space<vmem>>, vector<1x4x128xf32>,
    %c0_i32_38 = arith.constant 0 : i32
    %72 = arith.cmpi eq, %arg0, %c0_i32_38 : i32
    %73 = arith.extui %72 : i1 to i32
    %c0_i32_39 = arith.constant 0 : i32
    %74 = arith.cmpi ne, %73, %c0_i32_39 : i32
    scf.if %74 {
      %c0_40 = arith.constant 0 : index
      %c0_41 = arith.constant 0 : index
      %c0_42 = arith.constant 0 : index
      %75 = vector.load %arg7[%c0_40, %c0_41, %c0_42] : memref<4x4x128xf32, #tpu.memory_space<vmem>>, vector<1x4x128xf32>
      %76 = vector.shape_cast %75 : vector<1x4x128xf32> to vector<4x128xf32>
      %77 = vector.shape_cast %76 : vector<4x128xf32> to vector<1x4x128xf32>
      %cst_43 = arith.constant dense<0.000000e+00> : vector<1xf32>
      %78 = vector.multi_reduction <add>, %77, %cst_43 [1, 2] : vector<1x4x128xf32> to vector<1xf32>
      %79 = vector.shape_cast %78 : vector<1xf32> to vector<1x1x1xf32>
      %80 = vector.extract %79[0, 0, 0] : f32 from vector<1x1x1xf32>
      %c0_44 = arith.constant 0 : index
      %c0_45 = arith.constant 0 : index
      %81 = memref.load %arg6[%c0_44, %c0_45] : memref<1x4xf32, #tpu.memory_space<smem>>
      memref.store %80, %arg6[%c0_44, %c0_45] : memref<1x4xf32, #tpu.memory_space<smem>>
      %c1_46 = arith.constant 1 : index
      %c0_47 = arith.constant 0 : index
      %c0_48 = arith.constant 0 : index
      %82 = vector.load %arg7[%c1_46, %c0_47, %c0_48] : memref<4x4x128xf32, #tpu.memory_space<vmem>>, vector<1x4x128xf32>
      %83 = vector.shape_cast %82 : vector<1x4x128xf32> to vector<4x128xf32>
      %84 = vector.shape_cast %83 : vector<4x128xf32> to vector<1x4x128xf32>
      %cst_49 = arith.constant dense<0.000000e+00> : vector<1xf32>
      %85 = vector.multi_reduction <add>, %84, %cst_49 [1, 2] : vector<1x4x128xf32> to vector<1xf32>
      %86 = vector.shape_cast %85 : vector<1xf32> to vector<1x1x1xf32>
      %87 = vector.extract %86[0, 0, 0] : f32 from vector<1x1x1xf32>
      %c0_50 = arith.constant 0 : index
      %c1_51 = arith.constant 1 : index
      %88 = memref.load %arg6[%c0_50, %c1_51] : memref<1x4xf32, #tpu.memory_space<smem>>
      memref.store %87, %arg6[%c0_50, %c1_51] : memref<1x4xf32, #tpu.memory_space<smem>>
      %c2_52 = arith.constant 2 : index
      %c0_53 = arith.constant 0 : index
      %c0_54 = arith.constant 0 : index
      %89 = vector.load %arg7[%c2_52, %c0_53, %c0_54] : memref<4x4x128xf32, #tpu.memory_space<vmem>>, vector<1x4x128xf32>
      %90 = vector.shape_cast %89 : vector<1x4x128xf32> to vector<4x128xf32>
      %91 = vector.shape_cast %90 : vector<4x128xf32> to vector<1x4x128xf32>
      %cst_55 = arith.constant dense<0.000000e+00> : vector<1xf32>
      %92 = vector.multi_reduction <add>, %91, %cst_55 [1, 2] : vector<1x4x128xf32> to vector<1xf32>
      %93 = vector.shape_cast %92 : vector<1xf32> to vector<1x1x1xf32>
      %94 = vector.extract %93[0, 0, 0] : f32 from vector<1x1x1xf32>
      %c0_56 = arith.constant 0 : index
      %c2_57 = arith.constant 2 : index
      %95 = memref.load %arg6[%c0_56, %c2_57] : memref<1x4xf32, #tpu.memory_space<smem>>
      memref.store %94, %arg6[%c0_56, %c2_57] : memref<1x4xf32, #tpu.memory_space<smem>>
      %c3_58 = arith.constant 3 : index
      %c0_59 = arith.constant 0 : index
      %c0_60 = arith.constant 0 : index
      %96 = vector.load %arg7[%c3_58, %c0_59, %c0_60] : memref<4x4x128xf32, #tpu.memory_space<vmem>>, vector<1x4x128xf32>
      %97 = vector.shape_cast %96 : vector<1x4x128xf32> to vector<4x128xf32>
      %98 = vector.shape_cast %97 : vector<4x128xf32> to vector<1x4x128xf32>
      %cst_61 = arith.constant dense<0.000000e+00> : vector<1xf32>
      %99 = vector.multi_reduction <add>, %98, %cst_61 [1, 2] : vector<1x4x128xf32> to vector<1xf32>
      %100 = vector.shape_cast %99 : vector<1xf32> to vector<1x1x1xf32>
      %101 = vector.extract %100[0, 0, 0] : f32 from vector<1x1x1xf32>
      %c0_62 = arith.constant 0 : index
      %c3_63 = arith.constant 3 : index
      %102 = memref.load %arg6[%c0_62, %c3_63] : memref<1x4xf32, #tpu.memory_space<smem>>
      memref.store %101, %arg6[%c0_62, %c3_63] : memref<1x4xf32, #tpu.memory_space<smem>>
    } else {
    }
    return
  }
  func.func @transform_0(%arg0: i32) -> (i32, i32) {
    %c0_i32 = arith.constant 0 : i32
    %c0_i32_0 = arith.constant 0 : i32
    return %arg0, %c0_i32 : i32, i32
  }
  func.func @transform_1(%arg0: i32) -> (i32, i32) {
    %c0_i32 = arith.constant 0 : i32
    %c0_i32_0 = arith.constant 0 : i32
    return %arg0, %c0_i32 : i32, i32
  }
  func.func @transform_2(%arg0: i32) -> (i32, i32) {
    %c0_i32 = arith.constant 0 : i32
    %c0_i32_0 = arith.constant 0 : i32
    return %arg0, %c0_i32 : i32, i32
  }
  func.func @transform_3(%arg0: i32) -> (i32, i32) {
    %c0_i32 = arith.constant 0 : i32
    %c0_i32_0 = arith.constant 0 : i32
    return %arg0, %c0_i32 : i32, i32
  }
  func.func @transform_4(%arg0: i32) -> (i32, i32) {
    %c0_i32 = arith.constant 0 : i32
    %c0_i32_0 = arith.constant 0 : i32
    return %arg0, %c0_i32 : i32, i32
  }
  func.func @transform_5(%arg0: i32) -> (i32, i32) {
    %c0_i32 = arith.constant 0 : i32
    %c0_i32_0 = arith.constant 0 : i32
    %c0_i32_1 = arith.constant 0 : i32
    return %c0_i32, %c0_i32_0 : i32, i32
  }
}

</mosaic_0001>

<llo_original>
// kernel: tpu_custom_call.1
$region0: #{tpu_custom_call.1}
  #allocation0 [shape = 'u32[]', space=smem, size = 0x4, offset = 0x4, fixed_abs, tag = 'smem constant byte address 0x4 - core index']
  #allocation1 [shape = 'u32[72,128]{1,0:T(1,128)}', space=vmem, size = 0x9000, scoped, tag = 'internal scratch']
  #allocation2 [shape = 'f32[4,4,128]{2,1,0:T(4,128)}', space=vmem, size = 0x2000, scoped, tag = 'scratch operand']
  %s0 = inlined_call_operand.hbm [shape: f32[4,128], index: 0, kind: input, shape index: {}]
  %s1 = inlined_call_operand.hbm [shape: f32[4,128], index: 1, kind: input, shape index: {}]
  %s2 = inlined_call_operand.hbm [shape: f32[4,128], index: 2, kind: input, shape index: {}]
  %s3 = inlined_call_operand.hbm [shape: f32[4,128], index: 3, kind: input, shape index: {}]
  %s4 = inlined_call_operand.hbm [shape: f32[4,128], index: 4, kind: input, shape index: {}]
  %s5 = inlined_call_operand.hbm [shape: f32[1,4], index: 5, kind: output, shape index: {}]
  %s6 = sld [smem:[#allocation0]]
  $region58: #{tpu_custom_call.1} parent=0
    _
  %s8 = ssub.s32 1, %s6
  %s9 = scalar_select 0, %s8, %s6
  $region1: #{tpu_custom_call.1} parent=0
    #allocation3 [shape = 'u8[2048]{0}', space=vmem, size = 0x800, scoped, tag = 'input window, operand 0, single buffered']
    #allocation4 [shape = 's32[1]{0}', space=sflag, size = 0x4, scoped, tag = 'scoped memory for tpu_custom_call.1']
    #allocation5 [shape = 's32[1]{0}', space=sflag, size = 0x4, scoped, tag = 'scoped memory for tpu_custom_call.1']
    #allocation6 [shape = 'u8[2048]{0}', space=vmem, size = 0x800, scoped, tag = 'input window, operand 1, single buffered']
    #allocation7 [shape = 's32[1]{0}', space=sflag, size = 0x4, scoped, tag = 'scoped memory for tpu_custom_call.1']
    #allocation8 [shape = 'u8[2048]{0}', space=vmem, size = 0x800, scoped, tag = 'input window, operand 2, single buffered']
    #allocation9 [shape = 'u8[2048]{0}', space=vmem, size = 0x800, scoped, tag = 'input window, operand 3, single buffered']
    #allocation10 [shape = 's32[1]{0}', space=sflag, size = 0x4, scoped, tag = 'scoped memory for tpu_custom_call.1']
    #allocation11 [shape = 'u8[2048]{0}', space=vmem, size = 0x800, scoped, tag = 'input window, operand 4, single buffered']
    #allocation12 [shape = 'u8[512]{0}', space=smem, size = 0x200, scoped, tag = 'output window, operand 0, single buffered']
    %10 = vsyncpa [#allocation4], 0
    %11 = vsyncpa [#allocation7], 0
    %12 = vsyncpa [#allocation10], 0
    %13 = vsyncpa [#allocation5], 0
    // Predicated region
    $region2: #{tpu_custom_call.1} parent=1 // pred_check
      _
    $region3: #{tpu_custom_call.1} parent=1 // pred_check_branch
      %15 = sbr.rel (0) target = $region5
    $region4: #{tpu_custom_call.1} parent=1 // pred_region
      %17 = vsyncadd [#allocation4], 0
      %s19 = sshll.u32 %s0, 4
      %s20 = int_to_ptr.hbm [resolvable:$true] %s19
      %s21 = sshll.u32 [#allocation3], 4
      %s22 = int_to_ptr.vmem [resolvable:$true] %s21
      %24 = dma.hbm_to_vmem [thread:$0]  %s20, 64, %s22, [#allocation4]
    $region5: #{tpu_custom_call.1} parent=1 // pred_fallthru
      _
    // Predicated region
    $region6: #{tpu_custom_call.1} parent=1 // pred_check
      _
    $region7: #{tpu_custom_call.1} parent=1 // pred_check_branch
      %26 = sbr.rel (0) target = $region9
    $region8: #{tpu_custom_call.1} parent=1 // pred_region
      %28 = vsyncadd [#allocation7], 0
      %s30 = sshll.u32 %s1, 4
      %s31 = int_to_ptr.hbm [resolvable:$true] %s30
      %s32 = sshll.u32 [#allocation6], 4
      %s33 = int_to_ptr.vmem [resolvable:$true] %s32
      %35 = dma.hbm_to_vmem [thread:$0]  %s31, 64, %s33, [#allocation7]
    $region9: #{tpu_custom_call.1} parent=1 // pred_fallthru
      _
    // Predicated region
    $region10: #{tpu_custom_call.1} parent=1 // pred_check
      _
    $region11: #{tpu_custom_call.1} parent=1 // pred_check_branch
      %37 = sbr.rel (0) target = $region13
    $region12: #{tpu_custom_call.1} parent=1 // pred_region
      %39 = vsyncadd [#allocation7], 0
      %s41 = sshll.u32 %s2, 4
      %s42 = int_to_ptr.hbm [resolvable:$true] %s41
      %s43 = sshll.u32 [#allocation8], 4
      %s44 = int_to_ptr.vmem [resolvable:$true] %s43
      %46 = dma.hbm_to_vmem [thread:$0]  %s42, 64, %s44, [#allocation7]
    $region13: #{tpu_custom_call.1} parent=1 // pred_fallthru
      _
    // Predicated region
    $region14: #{tpu_custom_call.1} parent=1 // pred_check
      _
    $region15: #{tpu_custom_call.1} parent=1 // pred_check_branch
      %48 = sbr.rel (0) target = $region17
    $region16: #{tpu_custom_call.1} parent=1 // pred_region
      %50 = vsyncadd [#allocation10], 0
      %s52 = sshll.u32 %s3, 4
      %s53 = int_to_ptr.hbm [resolvable:$true] %s52
      %s54 = sshll.u32 [#allocation9], 4
      %s55 = int_to_ptr.vmem [resolvable:$true] %s54
      %57 = dma.hbm_to_vmem [thread:$0]  %s53, 64, %s55, [#allocation10]
    $region17: #{tpu_custom_call.1} parent=1 // pred_fallthru
      _
    // Predicated region
    $region18: #{tpu_custom_call.1} parent=1 // pred_check
      _
    $region19: #{tpu_custom_call.1} parent=1 // pred_check_branch
      %59 = sbr.rel (0) target = $region21
    $region20: #{tpu_custom_call.1} parent=1 // pred_region
      %61 = vsyncadd [#allocation10], 0
      %s63 = sshll.u32 %s4, 4
      %s64 = int_to_ptr.hbm [resolvable:$true] %s63
      %s65 = sshll.u32 [#allocation11], 4
      %s66 = int_to_ptr.vmem [resolvable:$true] %s65
      %68 = dma.hbm_to_vmem [thread:$0]  %s64, 64, %s66, [#allocation10]
    $region21: #{tpu_custom_call.1} parent=1 // pred_fallthru
      _
    // Predicated region
    $region22: #{tpu_custom_call.1} parent=1 // pred_check
      _
    $region23: #{tpu_custom_call.1} parent=1 // pred_check_branch
      %70 = sbr.rel (0) target = $region25
    $region24: #{tpu_custom_call.1} parent=1 // pred_region
      %72 = dma.done [#allocation4], 64
    $region25: #{tpu_custom_call.1} parent=1 // pred_fallthru
      _
    // Predicated region
    $region26: #{tpu_custom_call.1} parent=1 // pred_check
      _
    $region27: #{tpu_custom_call.1} parent=1 // pred_check_branch
      %74 = sbr.rel (0) target = $region29
    $region28: #{tpu_custom_call.1} parent=1 // pred_region
      %76 = dma.done [#allocation7], 64
    $region29: #{tpu_custom_call.1} parent=1 // pred_fallthru
      _
    // Predicated region
    $region30: #{tpu_custom_call.1} parent=1 // pred_check
      _
    $region31: #{tpu_custom_call.1} parent=1 // pred_check_branch
      %78 = sbr.rel (0) target = $region33
    $region32: #{tpu_custom_call.1} parent=1 // pred_region
      %80 = dma.done [#allocation7], 64
    $region33: #{tpu_custom_call.1} parent=1 // pred_fallthru
      _
    // Predicated region
    $region34: #{tpu_custom_call.1} parent=1 // pred_check
      _
    $region35: #{tpu_custom_call.1} parent=1 // pred_check_branch
      %82 = sbr.rel (0) target = $region37
    $region36: #{tpu_custom_call.1} parent=1 // pred_region
      %84 = dma.done [#allocation10], 64
    $region37: #{tpu_custom_call.1} parent=1 // pred_fallthru
      _
    // Predicated region
    $region38: #{tpu_custom_call.1} parent=1 // pred_check
      _
    $region39: #{tpu_custom_call.1} parent=1 // pred_check_branch
      %86 = sbr.rel (0) target = $region41
    $region40: #{tpu_custom_call.1} parent=1 // pred_region
      %88 = dma.done [#allocation10], 64
    $region41: #{tpu_custom_call.1} parent=1 // pred_fallthru
      _
    %p89 = scmp.eq.s32.totalorder 0, 0
    // Predicated region
    $region42: #{tpu_custom_call.1} parent=1 // pred_check
      %p90 = pneg %p89
    $region43: #{tpu_custom_call.1} parent=1 // pred_check_branch
      %92 = sbr.rel (%p90) target = $region45
    $region44: #{tpu_custom_call.1} parent=1 // pred_region
      %93 = vst [vmem:[#allocation2] sm:$0xf] 0.0
      %94 = vst [vmem:[#allocation2 + $0x4] sm:$0xf] 0.0
      %95 = vst [vmem:[#allocation2 + $0x8] sm:$0xf] 0.0
      %96 = vst [vmem:[#allocation2 + $0xc] sm:$0xf] 0.0
    $region45: #{tpu_custom_call.1} parent=1 // pred_fallthru
      _
    %v97 = vld [vmem:[#allocation11] sm:$0xf]
    %v98 = vld [vmem:[#allocation3] sm:$0xf]
    %v99 = vmax.f32 %v98, 0.0
    %v100 = vmul.f32 %v98, %v97
    %v101 = vsub.f32 %v99, %v100
    %v102 = vand.u32 2147483647, %v98
    %v103 = vsub.f32 0.0, %v102
    %v104 = vmul.f32 %v103, 1.442695
    %v105 = vpow.pop %v104
    %v106 = vadd.f32 %v105, 1.0
    %v107 = vlog2.pop %v106
    %v108 = vmul.f32 %v107, 0.6931472
    %v109 = vmul.f32 -0.5, %v105
    %v110 = vadd.f32 %v109, 1.0
    %v111 = vmul.f32 %v110, %v105
    %v112 = vand.u32 2147483647, %v105
    %vm113 = vcmp.lt.f32.partialorder %v112, 0.0004427343
    %v114 = vsel %vm113, %v111, %v108
    %v115 = vadd.f32 %v101, %v114
    %v116 = vld [vmem:[#allocation2] sm:$0xf]
    %v117 = vadd.f32 %v116, %v115
    %118 = vst [vmem:[#allocation2] sm:$0xf] %v117
    %v119 = vld [vmem:[#allocation6] sm:$0xf]
    %v120 = vmax.f32 %v119, 0.0
    %v121 = vmul.f32 %v119, %v97
    %v122 = vsub.f32 %v120, %v121
    %v123 = vand.u32 2147483647, %v119
    %v124 = vsub.f32 0.0, %v123
    %v125 = vmul.f32 %v124, 1.442695
    %v126 = vpow.pop %v125
    %v127 = vadd.f32 %v126, 1.0
    %v128 = vlog2.pop %v127
    %v129 = vmul.f32 %v128, 0.6931472
    %v130 = vmul.f32 -0.5, %v126
    %v131 = vadd.f32 %v130, 1.0
    %v132 = vmul.f32 %v131, %v126
    %v133 = vand.u32 2147483647, %v126
    %vm134 = vcmp.lt.f32.partialorder %v133, 0.0004427343
    %v135 = vsel %vm134, %v132, %v129
    %v136 = vadd.f32 %v122, %v135
    %s137 = scalar_lea.vmem [#allocation2], 4
    %v138 = vld [vmem:[%s137] sm:$0xf]
    %v139 = vadd.f32 %v138, %v136
    %140 = vst [vmem:[%s137] sm:$0xf] %v139
    %v141 = vld [vmem:[#allocation8] sm:$0xf]
    %v142 = vmax.f32 %v141, 0.0
    %v143 = vmul.f32 %v141, %v97
    %v144 = vsub.f32 %v142, %v143
    %v145 = vand.u32 2147483647, %v141
    %v146 = vsub.f32 0.0, %v145
    %v147 = vmul.f32 %v146, 1.442695
    %v148 = vpow.pop %v147
    %v149 = vadd.f32 %v148, 1.0
    %v150 = vlog2.pop %v149
    %v151 = vmul.f32 %v150, 0.6931472
    %v152 = vmul.f32 -0.5, %v148
    %v153 = vadd.f32 %v152, 1.0
    %v154 = vmul.f32 %v153, %v148
    %v155 = vand.u32 2147483647, %v148
    %vm156 = vcmp.lt.f32.partialorder %v155, 0.0004427343
    %v157 = vsel %vm156, %v154, %v151
    %v158 = vadd.f32 %v144, %v157
    %s159 = scalar_lea.vmem [#allocation2], 8
    %v160 = vld [vmem:[%s159] sm:$0xf]
    %v161 = vadd.f32 %v160, %v158
    %162 = vst [vmem:[%s159] sm:$0xf] %v161
    %v163 = vld [vmem:[#allocation9] sm:$0xf]
    %v164 = vmax.f32 %v163, 0.0
    %v165 = vmul.f32 %v163, %v97
    %v166 = vsub.f32 %v164, %v165
    %v167 = vand.u32 2147483647, %v163
    %v168 = vsub.f32 0.0, %v167
    %v169 = vmul.f32 %v168, 1.442695
    %v170 = vpow.pop %v169
    %v171 = vadd.f32 %v170, 1.0
    %v172 = vlog2.pop %v171
    %v173 = vmul.f32 %v172, 0.6931472
    %v174 = vmul.f32 -0.5, %v170
    %v175 = vadd.f32 %v174, 1.0
    %v176 = vmul.f32 %v175, %v170
    %v177 = vand.u32 2147483647, %v170
    %vm178 = vcmp.lt.f32.partialorder %v177, 0.0004427343
    %v179 = vsel %vm178, %v176, %v173
    %v180 = vadd.f32 %v166, %v179
    %s181 = scalar_lea.vmem [#allocation2], 12
    %v182 = vld [vmem:[%s181] sm:$0xf]
    %v183 = vadd.f32 %v182, %v180
    %184 = vst [vmem:[%s181] sm:$0xf] %v183
    // Predicated region
    $region46: #{tpu_custom_call.1} parent=1 // pred_check
      %p185 = pneg %p89
    $region47: #{tpu_custom_call.1} parent=1 // pred_check_branch
      %187 = sbr.rel (%p185) target = $region49
    $region48: #{tpu_custom_call.1} parent=1 // pred_region
      %v188 = vld [vmem:[#allocation2] sm:$0xf]
      %vm189 = vcmask 1043456
      %v190 = vsel %vm189, %v188, 0.0
      %191 = vadd.xlane.f32.xlu0 %v190
      %v192 = vpop.xlane.xlu0 %191
      %v193 = vrot.slane %v192, 4
      %v194 = vadd.f32 %v192, %v193
      %v195 = vrot.slane %v194, 2
      %v196 = vadd.f32 %v194, %v195
      %v197 = vrot.slane %v196, 1
      %v198 = vadd.f32 %v196, %v197
      %s199 = vtos %v198
      %s200 = scalar_lea.smem [#allocation12], 0
      %201 = sst [smem:[%s200]] %s199
      %v202 = vld [vmem:[%s137] sm:$0xf]
      %v203 = vsel %vm189, %v202, 0.0
      %204 = vadd.xlane.f32.xlu0 %v203
      %v205 = vpop.xlane.xlu0 %204
      %v206 = vrot.slane %v205, 4
      %v207 = vadd.f32 %v205, %v206
      %v208 = vrot.slane %v207, 2
      %v209 = vadd.f32 %v207, %v208
      %v210 = vrot.slane %v209, 1
      %v211 = vadd.f32 %v209, %v210
      %s212 = vtos %v211
      %s213 = scalar_lea.smem [#allocation12], 1
      %214 = sst [smem:[%s213]] %s212
      %v215 = vld [vmem:[%s159] sm:$0xf]
      %v216 = vsel %vm189, %v215, 0.0
      %217 = vadd.xlane.f32.xlu0 %v216
      %v218 = vpop.xlane.xlu0 %217
      %v219 = vrot.slane %v218, 4
      %v220 = vadd.f32 %v218, %v219
      %v221 = vrot.slane %v220, 2
      %v222 = vadd.f32 %v220, %v221
      %v223 = vrot.slane %v222, 1
      %v224 = vadd.f32 %v222, %v223
      %s225 = vtos %v224
      %s226 = scalar_lea.smem [#allocation12], 2
      %227 = sst [smem:[%s226]] %s225
      %v228 = vld [vmem:[%s181] sm:$0xf]
      %v229 = vsel %vm189, %v228, 0.0
      %230 = vadd.xlane.f32.xlu0 %v229
      %v231 = vpop.xlane.xlu0 %230
      %v232 = vrot.slane %v231, 4
      %v233 = vadd.f32 %v231, %v232
      %v234 = vrot.slane %v233, 2
      %v235 = vadd.f32 %v233, %v234
      %v236 = vrot.slane %v235, 1
      %v237 = vadd.f32 %v235, %v236
      %s238 = vtos %v237
      %s239 = scalar_lea.smem [#allocation12], 3
      %240 = sst [smem:[%s239]] %s238
    $region49: #{tpu_custom_call.1} parent=1 // pred_fallthru
      _
    // Predicated region
    $region50: #{tpu_custom_call.1} parent=1 // pred_check
      _
    $region51: #{tpu_custom_call.1} parent=1 // pred_check_branch
      %242 = sbr.rel (0) target = $region53
    $region52: #{tpu_custom_call.1} parent=1 // pred_region
      %244 = vsyncadd [#allocation5], 0
      %s246 = sshll.u32 %s5, 4
      %s247 = int_to_ptr.hbm [resolvable:$true] %s246
      %249 = dma.smem_to_hbm [#allocation12], 16, %s247, [#allocation5]
    $region53: #{tpu_custom_call.1} parent=1 // pred_fallthru
      _
    // Predicated region
    $region54: #{tpu_custom_call.1} parent=1 // pred_check
      _
    $region55: #{tpu_custom_call.1} parent=1 // pred_check_branch
      %251 = sbr.rel (0) target = $region57
    $region56: #{tpu_custom_call.1} parent=1 // pred_region
      %253 = dma.done [#allocation5], 16
    $region57: #{tpu_custom_call.1} parent=1 // pred_fallthru
      _
    %254 = sfence
    %255 = vsyncpa [#allocation4], 1
    %256 = vsyncpa [#allocation7], 1
    %257 = vsyncpa [#allocation10], 1
    %258 = vsyncpa [#allocation5], 1

</llo_original>
